<compile_context>
chip_gen: v5e
topology: v5e:2x2
jax: 0.10.0
libtpu: 0.0.40
codegen_flags: <defaults>
</compile_context>

<pallas_src>
import jax
import jax.numpy as jnp
from jax.experimental import pallas as pl
from jax.experimental.pallas import tpu as pltpu


# --------------------------------------------------------------------------
# Kernels
# --------------------------------------------------------------------------
def _outconv_vpu_kernel(w_ref, b_ref, x_ref, o_ref):
    """Tiny-channel path: Cout*Cin plane FMAs on the VPU.

    w_ref: SMEM (Cout, Cin) f32
    b_ref: SMEM (Cout,)     f32
    x_ref: VMEM (1, Cin, TH, TW)
    o_ref: VMEM (1, Cout, TH, TW)
    """
    _, cin, _, _ = x_ref.shape
    _, cout, _, _ = o_ref.shape
    for co in range(cout):
        acc = (x_ref[0, 0].astype(jnp.float32) * w_ref[co, 0]
               + b_ref[co])                                   # (TH, TW)
        for ci in range(1, cin):
            acc = acc + x_ref[0, ci].astype(jnp.float32) * w_ref[co, ci]
        # Store each channel plane immediately: lane/sublane-dense, no
        # concatenate, no long-lived accumulators.
        o_ref[0, co] = acc.astype(o_ref.dtype)


def _outconv_mxu_kernel(w_ref, b_ref, x_ref, o_ref, acc_ref):
    """Large-channel path: (Cout,TK) @ (TK,TS) on the MXU, K-accumulated.

    w_ref:   VMEM (Cout, TK)   input dtype
    b_ref:   VMEM (Cout, 1)    f32
    x_ref:   VMEM (1, TK, TS)  input dtype
    o_ref:   VMEM (1, Cout, TS)
    acc_ref: VMEM (Cout, TS)   f32 scratch
    """
    k = pl.program_id(2)

    @pl.when(k == 0)
    def _():
        acc_ref[...] = jnp.zeros_like(acc_ref)

    acc_ref[...] += jnp.dot(w_ref[...], x_ref[0],
                            preferred_element_type=jnp.float32)

    @pl.when(k == pl.num_programs(2) - 1)
    def _():
        o_ref[0] = (acc_ref[...] + b_ref[...]).astype(o_ref.dtype)


# --------------------------------------------------------------------------
# Tile selection
# --------------------------------------------------------------------------
def _vpu_spatial_tiles(cin, cout, H, W, itemsize, budget=8 * 1024 * 1024):
    """Pick (TH, TW): TH multiple of 8 or == H, TW multiple of 128 or == W,
    sized so double-buffered input+output blocks stay under `budget`."""
    max_elems = max(budget // (2 * (cin + cout) * itemsize), 8 * 128)
    if W * 8 <= max_elems:
        tw = W                                   # full width: no ragged lanes
        th_cap = max_elems // W
        th = H if H <= th_cap else max((min(th_cap, H) // 8) * 8, 8)
    else:
        th = H if H < 8 else 8
        tw = max(((max_elems // max(th, 1)) // 128) * 128, 128)
        if tw >= W:
            tw = W
    return th, tw


def _mxu_tiles(cin, cout, hw, itemsize, budget=8 * 1024 * 1024):
    """K tile: a 128-multiple divisor of Cin if one exists (else full Cin,
    so no ragged reduction blocks).  Spatial tile: 128-multiple (or full HW),
    sized to keep double-buffered blocks + accumulator under `budget`."""
    tk = cin
    if cin % 128 == 0:
        for cand in range(min(cin, 512), 0, -128):
            if cin % cand == 0:
                tk = cand
                break
    per_lane = 2 * (tk + cout) * itemsize + 4 * cout
    ts = max((budget // per_lane) // 128 * 128, 128)
    if ts >= hw:
        ts = hw                                   # full-extent exemption
    return tk, ts


# --------------------------------------------------------------------------
# Wrappers
# --------------------------------------------------------------------------
def _out_conv_vpu(x, wm, bm):
    N, Cin, H, W = x.shape
    Cout = wm.shape[0]
    itemsize = jnp.dtype(x.dtype).itemsize
    th, tw = _vpu_spatial_tiles(Cin, Cout, H, W, itemsize)
    grid = (N, pl.cdiv(H, th), pl.cdiv(W, tw))

    flops = 2 * N * H * W * Cin * Cout
    bytes_accessed = itemsize * (N * Cin * H * W + N * Cout * H * W) \
        + 4 * Cout * (Cin + 1)

    return pl.pallas_call(
        _outconv_vpu_kernel,
        out_shape=jax.ShapeDtypeStruct((N, Cout, H, W), x.dtype),
        grid=grid,
        in_specs=[
            pl.BlockSpec(memory_space=pltpu.MemorySpace.SMEM),   # (Cout, Cin)
            pl.BlockSpec(memory_space=pltpu.MemorySpace.SMEM),   # (Cout,)
            pl.BlockSpec((1, Cin, th, tw), lambda n, i, j: (n, 0, i, j)),
        ],
        out_specs=pl.BlockSpec((1, Cout, th, tw), lambda n, i, j: (n, 0, i, j)),
        compiler_params=pltpu.CompilerParams(
            dimension_semantics=("parallel", "parallel", "parallel"),
            vmem_limit_bytes=32 * 1024 * 1024),
        cost_estimate=pl.CostEstimate(flops=flops, transcendentals=0,
                                      bytes_accessed=bytes_accessed),
    )(wm, bm, x)


def _out_conv_mxu(x, wm, bm):
    N, Cin, H, W = x.shape
    Cout = wm.shape[0]
    HW = H * W
    itemsize = jnp.dtype(x.dtype).itemsize
    tk, ts = _mxu_tiles(Cin, Cout, HW, itemsize)

    # Merging H,W here costs one layout copy, but this path is only taken
    # for large channel counts where the 1x1 conv is MXU-dominated and the
    # contraction must be a plain 2-D matmul.
    xm = x.reshape(N, Cin, HW)
    w_mxu = wm.astype(x.dtype)        # bf16 operands feed the MXU natively

    grid = (N, pl.cdiv(HW, ts), Cin // tk)
    flops = 2 * N * HW * Cin * Cout
    bytes_accessed = itemsize * (N * Cin * HW + N * Cout * HW) \
        + 4 * Cout * (Cin + 1)

    out = pl.pallas_call(
        _outconv_mxu_kernel,
        out_shape=jax.ShapeDtypeStruct((N, Cout, HW), x.dtype),
        grid=grid,
        in_specs=[
            pl.BlockSpec((Cout, tk), lambda n, s, k: (0, k)),
            pl.BlockSpec((Cout, 1), lambda n, s, k: (0, 0)),
            pl.BlockSpec((1, tk, ts), lambda n, s, k: (n, k, s)),
        ],
        out_specs=pl.BlockSpec((1, Cout, ts), lambda n, s, k: (n, 0, s)),
        scratch_shapes=[pltpu.VMEM((Cout, ts), jnp.float32)],
        compiler_params=pltpu.CompilerParams(
            dimension_semantics=("parallel", "parallel", "arbitrary"),
            vmem_limit_bytes=32 * 1024 * 1024),
        cost_estimate=pl.CostEstimate(flops=flops, transcendentals=0,
                                      bytes_accessed=bytes_accessed),
    )(w_mxu, bm.reshape(Cout, 1).astype(jnp.float32), xm)
    return out.reshape(N, Cout, H, W)


def out_conv(x, weight, bias):
    """1x1 Conv2d forward, matching torch.nn.Conv2d(in, out, kernel_size=1).

    x:      (N, Cin, H, W)   NCHW, like PyTorch
    weight: (Cout, Cin, 1, 1)
    bias:   (Cout,)
    returns (N, Cout, H, W)
    """
    N, Cin, H, W = x.shape
    Cout = weight.shape[0]
    wm = weight.reshape(Cout, Cin).astype(jnp.float32)
    bm = bias.astype(jnp.float32)

    if Cin * Cout <= 128:
        # Tiny channel mix (the OutConv case): VPU plane FMAs, weights in SMEM.
        return _out_conv_vpu(x, wm, bm)
    # Larger channel counts: MXU contraction with a K-tiled accumulator.
    return _out_conv_mxu(x, wm, bm)


# --------------------------------------------------------------------------
# Demo / self-check
# --------------------------------------------------------------------------
if __name__ == "__main__":
    def _ref(x, weight, bias):
        Cout, Cin = weight.shape[0], weight.shape[1]
        return (jnp.einsum("nchw,oc->nohw", x, weight.reshape(Cout, Cin))
                + bias.reshape(1, Cout, 1, 1))

    key = jax.random.PRNGKey(0)

    # Main case: batch=2, in_channels=4, out_channels=3, spatial=16x16.
    N, Cin, Cout, H, W = 2, 4, 3, 16, 16
    kx, kw, kb, k2 = jax.random.split(key, 4)
    x = jax.random.normal(kx, (N, Cin, H, W), dtype=jnp.float32)
    bound = 1.0 / jnp.sqrt(Cin)
    weight = jax.random.uniform(kw, (Cout, Cin, 1, 1), dtype=jnp.float32,
                                minval=-bound, maxval=bound)
    bias = jax.random.uniform(kb, (Cout,), dtype=jnp.float32,
                              minval=-bound, maxval=bound)

    y = jax.block_until_ready(out_conv(x, weight, bias))
    y_ref = _ref(x, weight, bias)
    assert y.shape == (N, Cout, H, W), y.shape
    assert jnp.allclose(y, y_ref, atol=1e-5, rtol=1e-5), \
        float(jnp.max(jnp.abs(y - y_ref)))

    # Also exercise the large-channel MXU path once.
    N2, Cin2, Cout2, H2, W2 = 1, 192, 5, 16, 16
    kx2, kw2, kb2 = jax.random.split(k2, 3)
    x2 = jax.random.normal(kx2, (N2, Cin2, H2, W2), dtype=jnp.float32)
    bound2 = 1.0 / jnp.sqrt(Cin2)
    w2 = jax.random.uniform(kw2, (Cout2, Cin2, 1, 1), dtype=jnp.float32,
                            minval=-bound2, maxval=bound2)
    b2 = jax.random.uniform(kb2, (Cout2,), dtype=jnp.float32,
                            minval=-bound2, maxval=bound2)
    y2 = jax.block_until_ready(out_conv(x2, w2, b2))
    y2_ref = _ref(x2, w2, b2)
    assert jnp.allclose(y2, y2_ref, atol=1e-4, rtol=1e-4), \
        float(jnp.max(jnp.abs(y2 - y2_ref)))

    print("KERNEL_OK")
</pallas_src>

<mosaic_0001>
module attributes {stable_mosaic.version = 11 : i64} {
  func.func @_outconv_vpu_kernel(%arg0: i32, %arg1: i32, %arg2: i32, %arg3: memref<3x4xf32, #tpu.memory_space<smem>>, %arg4: memref<3xf32, #tpu.memory_space<smem>>, %arg5: memref<1x4x16x16xf32, #tpu.memory_space<vmem>>, %arg6: memref<1x3x16x16xf32, #tpu.memory_space<vmem>>) attributes {dimension_semantics = [#tpu.dimension_semantics<parallel>, #tpu.dimension_semantics<parallel>, #tpu.dimension_semantics<parallel>], iteration_bounds = array<i64: 2, 1, 1>, scalar_prefetch = 0 : i64, scratch_operands = 0 : i64, tpu.core_type = #tpu.core_type<tc>, window_params = [{transform_indices = @transform_0, window_bounds = array<i64: 3, 4>}, {transform_indices = @transform_1, window_bounds = array<i64: 3>}, {transform_indices = @transform_2, window_bounds = array<i64: 1, 4, 16, 16>}, {transform_indices = @transform_3, window_bounds = array<i64: 1, 3, 16, 16>}]} {
    %c0 = arith.constant 0 : index
    %c0_0 = arith.constant 0 : index
    %c0_1 = arith.constant 0 : index
    %c0_2 = arith.constant 0 : index
    %0 = vector.load %arg5[%c0, %c0_0, %c0_1, %c0_2] : memref<1x4x16x16xf32, #tpu.memory_space<vmem>>, vector<1x1x16x16xf32>
    %1 = vector.shape_cast %0 : vector<1x1x16x16xf32> to vector<16x16xf32>
    %c0_3 = arith.constant 0 : index
    %c0_4 = arith.constant 0 : index
    %2 = memref.load %arg3[%c0_3, %c0_4] : memref<3x4xf32, #tpu.memory_space<smem>>
    %3 = vector.broadcast %2 : f32 to vector<16x16xf32>
    %4 = arith.mulf %1, %3 : vector<16x16xf32>
    %c0_5 = arith.constant 0 : index
    %5 = memref.load %arg4[%c0_5] : memref<3xf32, #tpu.memory_space<smem>>
    %6 = vector.broadcast %5 : f32 to vector<16x16xf32>
    %7 = arith.addf %4, %6 : vector<16x16xf32>
    %c0_6 = arith.constant 0 : index
    %c1 = arith.constant 1 : index
    %c0_7 = arith.constant 0 : index
    %c0_8 = arith.constant 0 : index
    %8 = vector.load %arg5[%c0_6, %c1, %c0_7, %c0_8] : memref<1x4x16x16xf32, #tpu.memory_space<vmem>>, vector<1x1x16x16xf32>
    %9 = vector.shape_cast %8 : vector<1x1x16x16xf32> to vector<16x16xf32>
    %c0_9 = arith.constant 0 : index
    %c1_10 = arith.constant 1 : index
    %10 = memref.load %arg3[%c0_9, %c1_10] : memref<3x4xf32, #tpu.memory_space<smem>>
    %11 = vector.broadcast %10 : f32 to vector<16x16xf32>
    %12 = arith.mulf %9, %11 : vector<16x16xf32>
    %13 = arith.addf %7, %12 : vector<16x16xf32>
    %c0_11 = arith.constant 0 : index
    %c2 = arith.constant 2 : index
    %c0_12 = arith.constant 0 : index
    %c0_13 = arith.constant 0 : index
    %14 = vector.load %arg5[%c0_11, %c2, %c0_12, %c0_13] : memref<1x4x16x16xf32, #tpu.memory_space<vmem>>, vector<1x1x16x16xf32>
    %15 = vector.shape_cast %14 : vector<1x1x16x16xf32> to vector<16x16xf32>
    %c0_14 = arith.constant 0 : index
    %c2_15 = arith.constant 2 : index
    %16 = memref.load %arg3[%c0_14, %c2_15] : memref<3x4xf32, #tpu.memory_space<smem>>
    %17 = vector.broadcast %16 : f32 to vector<16x16xf32>
    %18 = arith.mulf %15, %17 : vector<16x16xf32>
    %19 = arith.addf %13, %18 : vector<16x16xf32>
    %c0_16 = arith.constant 0 : index
    %c3 = arith.constant 3 : index
    %c0_17 = arith.constant 0 : index
    %c0_18 = arith.constant 0 : index
    %20 = vector.load %arg5[%c0_16, %c3, %c0_17, %c0_18] : memref<1x4x16x16xf32, #tpu.memory_space<vmem>>, vector<1x1x16x16xf32>
    %21 = vector.shape_cast %20 : vector<1x1x16x16xf32> to vector<16x16xf32>
    %c0_19 = arith.constant 0 : index
    %c3_20 = arith.constant 3 : index
    %22 = memref.load %arg3[%c0_19, %c3_20] : memref<3x4xf32, #tpu.memory_space<smem>>
    %23 = vector.broadcast %22 : f32 to vector<16x16xf32>
    %24 = arith.mulf %21, %23 : vector<16x16xf32>
    %25 = arith.addf %19, %24 : vector<16x16xf32>
    %c0_21 = arith.constant 0 : index
    %c0_22 = arith.constant 0 : index
    %c0_23 = arith.constant 0 : index
    %c0_24 = arith.constant 0 : index
    %26 = vector.load %arg6[%c0_21, %c0_22, %c0_23, %c0_24] : memref<1x3x16x16xf32, #tpu.memory_space<vmem>>, vector<1x1x16x16xf32>
    %27 = vector.shape_cast %26 : vector<1x1x16x16xf32> to vector<16x16xf32>
    %28 = vector.shape_cast %25 : vector<16x16xf32> to vector<1x1x16x16xf32>
    tpu.vector_store %arg6[%c0_21, %c0_22, %c0_23, %c0_24], %28 {strides = array<i32>} : memref<1x3x16x16xf32, #tpu.memory_space<vmem>>, vector<1x1x16x16xf32>,
    %c0_25 = arith.constant 0 : index
    %c0_26 = arith.constant 0 : index
    %c0_27 = arith.constant 0 : index
    %c0_28 = arith.constant 0 : index
    %29 = vector.load %arg5[%c0_25, %c0_26, %c0_27, %c0_28] : memref<1x4x16x16xf32, #tpu.memory_space<vmem>>, vector<1x1x16x16xf32>
    %30 = vector.shape_cast %29 : vector<1x1x16x16xf32> to vector<16x16xf32>
    %c1_29 = arith.constant 1 : index
    %c0_30 = arith.constant 0 : index
    %31 = memref.load %arg3[%c1_29, %c0_30] : memref<3x4xf32, #tpu.memory_space<smem>>
    %32 = vector.broadcast %31 : f32 to vector<16x16xf32>
    %33 = arith.mulf %30, %32 : vector<16x16xf32>
    %c1_31 = arith.constant 1 : index
    %34 = memref.load %arg4[%c1_31] : memref<3xf32, #tpu.memory_space<smem>>
    %35 = vector.broadcast %34 : f32 to vector<16x16xf32>
    %36 = arith.addf %33, %35 : vector<16x16xf32>
    %c0_32 = arith.constant 0 : index
    %c1_33 = arith.constant 1 : index
    %c0_34 = arith.constant 0 : index
    %c0_35 = arith.constant 0 : index
    %37 = vector.load %arg5[%c0_32, %c1_33, %c0_34, %c0_35] : memref<1x4x16x16xf32, #tpu.memory_space<vmem>>, vector<1x1x16x16xf32>
    %38 = vector.shape_cast %37 : vector<1x1x16x16xf32> to vector<16x16xf32>
    %c1_36 = arith.constant 1 : index
    %c1_37 = arith.constant 1 : index
    %39 = memref.load %arg3[%c1_36, %c1_37] : memref<3x4xf32, #tpu.memory_space<smem>>
    %40 = vector.broadcast %39 : f32 to vector<16x16xf32>
    %41 = arith.mulf %38, %40 : vector<16x16xf32>
    %42 = arith.addf %36, %41 : vector<16x16xf32>
    %c0_38 = arith.constant 0 : index
    %c2_39 = arith.constant 2 : index
    %c0_40 = arith.constant 0 : index
    %c0_41 = arith.constant 0 : index
    %43 = vector.load %arg5[%c0_38, %c2_39, %c0_40, %c0_41] : memref<1x4x16x16xf32, #tpu.memory_space<vmem>>, vector<1x1x16x16xf32>
    %44 = vector.shape_cast %43 : vector<1x1x16x16xf32> to vector<16x16xf32>
    %c1_42 = arith.constant 1 : index
    %c2_43 = arith.constant 2 : index
    %45 = memref.load %arg3[%c1_42, %c2_43] : memref<3x4xf32, #tpu.memory_space<smem>>
    %46 = vector.broadcast %45 : f32 to vector<16x16xf32>
    %47 = arith.mulf %44, %46 : vector<16x16xf32>
    %48 = arith.addf %42, %47 : vector<16x16xf32>
    %c0_44 = arith.constant 0 : index
    %c3_45 = arith.constant 3 : index
    %c0_46 = arith.constant 0 : index
    %c0_47 = arith.constant 0 : index
    %49 = vector.load %arg5[%c0_44, %c3_45, %c0_46, %c0_47] : memref<1x4x16x16xf32, #tpu.memory_space<vmem>>, vector<1x1x16x16xf32>
    %50 = vector.shape_cast %49 : vector<1x1x16x16xf32> to vector<16x16xf32>
    %c1_48 = arith.constant 1 : index
    %c3_49 = arith.constant 3 : index
    %51 = memref.load %arg3[%c1_48, %c3_49] : memref<3x4xf32, #tpu.memory_space<smem>>
    %52 = vector.broadcast %51 : f32 to vector<16x16xf32>
    %53 = arith.mulf %50, %52 : vector<16x16xf32>
    %54 = arith.addf %48, %53 : vector<16x16xf32>
    %c0_50 = arith.constant 0 : index
    %c1_51 = arith.constant 1 : index
    %c0_52 = arith.constant 0 : index
    %c0_53 = arith.constant 0 : index
    %55 = vector.load %arg6[%c0_50, %c1_51, %c0_52, %c0_53] : memref<1x3x16x16xf32, #tpu.memory_space<vmem>>, vector<1x1x16x16xf32>
    %56 = vector.shape_cast %55 : vector<1x1x16x16xf32> to vector<16x16xf32>
    %57 = vector.shape_cast %54 : vector<16x16xf32> to vector<1x1x16x16xf32>
    tpu.vector_store %arg6[%c0_50, %c1_51, %c0_52, %c0_53], %57 {strides = array<i32>} : memref<1x3x16x16xf32, #tpu.memory_space<vmem>>, vector<1x1x16x16xf32>,
    %c0_54 = arith.constant 0 : index
    %c0_55 = arith.constant 0 : index
    %c0_56 = arith.constant 0 : index
    %c0_57 = arith.constant 0 : index
    %58 = vector.load %arg5[%c0_54, %c0_55, %c0_56, %c0_57] : memref<1x4x16x16xf32, #tpu.memory_space<vmem>>, vector<1x1x16x16xf32>
    %59 = vector.shape_cast %58 : vector<1x1x16x16xf32> to vector<16x16xf32>
    %c2_58 = arith.constant 2 : index
    %c0_59 = arith.constant 0 : index
    %60 = memref.load %arg3[%c2_58, %c0_59] : memref<3x4xf32, #tpu.memory_space<smem>>
    %61 = vector.broadcast %60 : f32 to vector<16x16xf32>
    %62 = arith.mulf %59, %61 : vector<16x16xf32>
    %c2_60 = arith.constant 2 : index
    %63 = memref.load %arg4[%c2_60] : memref<3xf32, #tpu.memory_space<smem>>
    %64 = vector.broadcast %63 : f32 to vector<16x16xf32>
    %65 = arith.addf %62, %64 : vector<16x16xf32>
    %c0_61 = arith.constant 0 : index
    %c1_62 = arith.constant 1 : index
    %c0_63 = arith.constant 0 : index
    %c0_64 = arith.constant 0 : index
    %66 = vector.load %arg5[%c0_61, %c1_62, %c0_63, %c0_64] : memref<1x4x16x16xf32, #tpu.memory_space<vmem>>, vector<1x1x16x16xf32>
    %67 = vector.shape_cast %66 : vector<1x1x16x16xf32> to vector<16x16xf32>
    %c2_65 = arith.constant 2 : index
    %c1_66 = arith.constant 1 : index
    %68 = memref.load %arg3[%c2_65, %c1_66] : memref<3x4xf32, #tpu.memory_space<smem>>
    %69 = vector.broadcast %68 : f32 to vector<16x16xf32>
    %70 = arith.mulf %67, %69 : vector<16x16xf32>
    %71 = arith.addf %65, %70 : vector<16x16xf32>
    %c0_67 = arith.constant 0 : index
    %c2_68 = arith.constant 2 : index
    %c0_69 = arith.constant 0 : index
    %c0_70 = arith.constant 0 : index
    %72 = vector.load %arg5[%c0_67, %c2_68, %c0_69, %c0_70] : memref<1x4x16x16xf32, #tpu.memory_space<vmem>>, vector<1x1x16x16xf32>
    %73 = vector.shape_cast %72 : vector<1x1x16x16xf32> to vector<16x16xf32>
    %c2_71 = arith.constant 2 : index
    %c2_72 = arith.constant 2 : index
    %74 = memref.load %arg3[%c2_71, %c2_72] : memref<3x4xf32, #tpu.memory_space<smem>>
    %75 = vector.broadcast %74 : f32 to vector<16x16xf32>
    %76 = arith.mulf %73, %75 : vector<16x16xf32>
    %77 = arith.addf %71, %76 : vector<16x16xf32>
    %c0_73 = arith.constant 0 : index
    %c3_74 = arith.constant 3 : index
    %c0_75 = arith.constant 0 : index
    %c0_76 = arith.constant 0 : index
    %78 = vector.load %arg5[%c0_73, %c3_74, %c0_75, %c0_76] : memref<1x4x16x16xf32, #tpu.memory_space<vmem>>, vector<1x1x16x16xf32>
    %79 = vector.shape_cast %78 : vector<1x1x16x16xf32> to vector<16x16xf32>
    %c2_77 = arith.constant 2 : index
    %c3_78 = arith.constant 3 : index
    %80 = memref.load %arg3[%c2_77, %c3_78] : memref<3x4xf32, #tpu.memory_space<smem>>
    %81 = vector.broadcast %80 : f32 to vector<16x16xf32>
    %82 = arith.mulf %79, %81 : vector<16x16xf32>
    %83 = arith.addf %77, %82 : vector<16x16xf32>
    %c0_79 = arith.constant 0 : index
    %c2_80 = arith.constant 2 : index
    %c0_81 = arith.constant 0 : index
    %c0_82 = arith.constant 0 : index
    %84 = vector.load %arg6[%c0_79, %c2_80, %c0_81, %c0_82] : memref<1x3x16x16xf32, #tpu.memory_space<vmem>>, vector<1x1x16x16xf32>
    %85 = vector.shape_cast %84 : vector<1x1x16x16xf32> to vector<16x16xf32>
    %86 = vector.shape_cast %83 : vector<16x16xf32> to vector<1x1x16x16xf32>
    tpu.vector_store %arg6[%c0_79, %c2_80, %c0_81, %c0_82], %86 {strides = array<i32>} : memref<1x3x16x16xf32, #tpu.memory_space<vmem>>, vector<1x1x16x16xf32>,
    return
  }
  func.func @transform_0(%arg0: i32, %arg1: i32, %arg2: i32) -> (i32, i32) {
    %c0_i32 = arith.constant 0 : i32
    %c0_i32_0 = arith.constant 0 : i32
    %c0_i32_1 = arith.constant 0 : i32
    return %c0_i32, %c0_i32_0 : i32, i32
  }
  func.func @transform_1(%arg0: i32, %arg1: i32, %arg2: i32) -> i32 {
    %c0_i32 = arith.constant 0 : i32
    %c0_i32_0 = arith.constant 0 : i32
    return %c0_i32 : i32
  }
  func.func @transform_2(%arg0: i32, %arg1: i32, %arg2: i32) -> (i32, i32, i32, i32) {
    %c0_i32 = arith.constant 0 : i32
    %c0_i32_0 = arith.constant 0 : i32
    return %arg0, %c0_i32, %arg1, %arg2 : i32, i32, i32, i32
  }
  func.func @transform_3(%arg0: i32, %arg1: i32, %arg2: i32) -> (i32, i32, i32, i32) {
    %c0_i32 = arith.constant 0 : i32
    %c0_i32_0 = arith.constant 0 : i32
    return %arg0, %c0_i32, %arg1, %arg2 : i32, i32, i32, i32
  }
}

</mosaic_0001>

<llo_original>
// kernel: tpu_custom_call.1
$region0: #{tpu_custom_call.1}
  #allocation0 [shape = 'u32[]', space=smem, size = 0x4, offset = 0x4, fixed_abs, tag = 'smem constant byte address 0x4 - core index']
  #allocation1 [shape = 'u32[72,128]{1,0:T(1,128)}', space=vmem, size = 0x9000, scoped, tag = 'internal scratch']
  %s0 = inlined_call_operand.hbm [shape: f32[3,4], index: 0, kind: input, shape index: {}]
  %s1 = inlined_call_operand.hbm [shape: f32[3], index: 1, kind: input, shape index: {}]
  %s2 = inlined_call_operand.hbm [shape: f32[2,4,16,16], index: 2, kind: input, shape index: {}]
  %s3 = inlined_call_operand.hbm [shape: f32[2,3,16,16], index: 3, kind: output, shape index: {}]
  %s4 = sld [smem:[#allocation0]]
  $region57: #{tpu_custom_call.1} parent=0
    _
  %s6 = ssub.s32 1, %s4
  %s7 = scalar_select 0, %s6, %s4
  $region1: #{tpu_custom_call.1} parent=0
    #allocation2 [shape = 'u8[2048]{0}', space=smem, size = 0x800, scoped, tag = 'input window, operand 0, single buffered']
    #allocation3 [shape = 's32[2]{0}', space=sflag, size = 0x8, scoped, tag = 'scoped memory for tpu_custom_call.1']
    #allocation4 [shape = 's32[2]{0}', space=sflag, size = 0x8, scoped, tag = 'scoped memory for tpu_custom_call.1']
    #allocation5 [shape = 's32[2]{0}', space=sflag, size = 0x8, scoped, tag = 'scoped memory for tpu_custom_call.1']
    #allocation6 [shape = 'u8[512]{0}', space=smem, size = 0x200, scoped, tag = 'input window, operand 1, single buffered']
    #allocation7 [shape = 's32[1]{0}', space=sflag, size = 0x4, scoped, tag = 'scoped memory for tpu_custom_call.1']
    #allocation8 [shape = 'u8[65536]{0}', space=vmem, size = 0x10000, scoped, tag = 'input window, operand 2']
    #allocation9 [shape = 'u8[49152]{0}', space=vmem, size = 0xc000, scoped, tag = 'output window, operand 0']
    %8 = vsyncpa [#allocation5], 0
    %9 = vsyncpa [#allocation7], 0
    %10 = vsyncpa [#allocation3], 0
    %s11 = scalar_lea.sflag [#allocation3], 1
    %12 = vsyncpa %s11, 0
    %13 = vsyncpa [#allocation4], 0
    %s14 = scalar_lea.sflag [#allocation4], 1
    %15 = vsyncpa %s14, 0
    loop: start=0, step=1, limit=4
    $region2: #{tpu_custom_call.1} parent=1 // loop_pre_header
      _
    $region3: #{tpu_custom_call.1} parent=1 // loop_header
      %s17 = sphi 0, %s21
      %p18 = scmp.ge.s32.totalorder %s17, 4
      %s24 = sphi 0, %s43
      %s25 = sphi 0, %s39
      %s26 = sphi 0, %s35
      %s27 = sphi 0, %s24
      %s28 = sphi 0, %s25
      %s29 = sphi 0, %s26
      %s30 = sphi 0, %s27
      %s31 = sphi 0, %s28
      %s32 = sphi 0, %s29
      %s44 = sphi 0, %s44
      %s46 = sphi 0, %s44
      %s47 = sphi 0, %s46
      %s61 = sphi 0, %s47
      %s65 = sphi 0, %s65
      %s67 = sphi 0, %s65
      %s68 = sphi 0, %s67
      %s82 = sphi 0, %s68
      %s92 = sphi 0, %s94
      %s95 = sphi 0, %s92
      %s96 = sphi 0, %s95
      %s112 = sphi 0, %s96
      %s122 = sphi 0, %s124
      %s125 = sphi 0, %s122
      %s126 = sphi 0, %s125
      %s142 = sphi 0, %s126
    $region4: #{tpu_custom_call.1} parent=1 // loop_header_branch
      %20 = sbr.rel (%p18) target = $region8
    $region5: #{tpu_custom_call.1} parent=1 // loop_body
      %s22 = ssub.s32 %s17, 1
      %s23 = ssub.s32 %s17, 2
      %s33 = sadd.s32 1, %s26
      %p34 = scmp.ge.s32.totalorder %s33, 1
      %s35 = scalar_select %p34, 0, %s33
      %s36 = sadd.s32 1, %s25
      %s37 = scalar_select %p34, %s36, %s25
      %p38 = scmp.ge.s32.totalorder %s37, 1
      %s39 = scalar_select %p38, 0, %s37
      %s40 = sadd.s32 1, %s24
      %s41 = scalar_select %p38, %s40, %s24
      %p42 = scmp.ge.s32.totalorder %s41, 2
      %s43 = scalar_select %p42, 0, %s41
      %s45 = sadd.s32 %s44, 1
      %p48 = scmp.eq.s32.totalorder %s17, 1
      %p49 = scmp.ne.s32.totalorder %s44, %s46
      %p50 = scmp.eq.s32.totalorder %s17, 0
      %p51 = por %p49, %p50
      %p52 = scmp.ne.s32.totalorder %s44, %s46
      %p53 = scmp.eq.s32.totalorder %s22, 1
      %p54 = por %p52, %p53
      %p55 = scmp.ne.s32.totalorder %s46, %s47
      %p56 = scmp.eq.s32.totalorder %s22, 0
      %p57 = por %p55, %p56
      %p58 = scmp.ne.s32.totalorder %s46, %s47
      %p59 = scmp.eq.s32.totalorder %s23, 1
      %p60 = por %p58, %p59
      %p62 = scmp.ne.s32.totalorder %s47, %s61
      %p63 = scmp.eq.s32.totalorder %s23, 0
      %p64 = por %p62, %p63
      %s66 = sadd.s32 %s65, 1
      %p69 = scmp.eq.s32.totalorder %s17, 1
      %p70 = scmp.ne.s32.totalorder %s65, %s67
      %p71 = scmp.eq.s32.totalorder %s17, 0
      %p72 = por %p70, %p71
      %p73 = scmp.ne.s32.totalorder %s65, %s67
      %p74 = scmp.eq.s32.totalorder %s22, 1
      %p75 = por %p73, %p74
      %p76 = scmp.ne.s32.totalorder %s67, %s68
      %p77 = scmp.eq.s32.totalorder %s22, 0
      %p78 = por %p76, %p77
      %p79 = scmp.ne.s32.totalorder %s67, %s68
      %p80 = scmp.eq.s32.totalorder %s23, 1
      %p81 = por %p79, %p80
      %p83 = scmp.ne.s32.totalorder %s68, %s82
      %p84 = scmp.eq.s32.totalorder %s23, 0
      %p85 = por %p83, %p84
      %s86 = ssub.s32 %s24, %s43
      %s87 = ssub.s32 %s25, %s39
      %s88 = sor.u32 %s86, %s87
      %s89 = ssub.s32 %s26, %s35
      %s90 = sor.u32 %s88, %s89
      %p91 = scmp.eq.s32.totalorder %s90, 0
      %s93 = sadd.s32 %s92, 1
      %s94 = scalar_select %p91, %s92, %s93
      %p97 = pneg %p91
      %p98 = scmp.eq.s32.totalorder %s17, 1
      %p99 = por %p97, %p98
      %p100 = scmp.ne.s32.totalorder %s92, %s95
      %p101 = scmp.eq.s32.totalorder %s17, 0
      %p102 = por %p100, %p101
      %p103 = scmp.ne.s32.totalorder %s92, %s95
      %p104 = scmp.eq.s32.totalorder %s22, 1
      %p105 = por %p103, %p104
      %p106 = scmp.ne.s32.totalorder %s95, %s96
      %p107 = scmp.eq.s32.totalorder %s22, 0
      %p108 = por %p106, %p107
      %p109 = scmp.ne.s32.totalorder %s95, %s96
      %p110 = scmp.eq.s32.totalorder %s23, 1
      %p111 = por %p109, %p110
      %p113 = scmp.ne.s32.totalorder %s96, %s112
      %p114 = scmp.eq.s32.totalorder %s23, 0
      %p115 = por %p113, %p114
      %s116 = ssub.s32 %s24, %s43
      %s117 = ssub.s32 %s25, %s39
      %s118 = sor.u32 %s116, %s117
      %s119 = ssub.s32 %s26, %s35
      %s120 = sor.u32 %s118, %s119
      %p121 = scmp.eq.s32.totalorder %s120, 0
      %s123 = sadd.s32 %s122, 1
      %s124 = scalar_select %p121, %s122, %s123
      %p127 = pneg %p121
      %p128 = scmp.eq.s32.totalorder %s17, 1
      %p129 = por %p127, %p128
      %p130 = scmp.ne.s32.totalorder %s122, %s125
      %p131 = scmp.eq.s32.totalorder %s17, 0
      %p132 = por %p130, %p131
      %p133 = scmp.ne.s32.totalorder %s122, %s125
      %p134 = scmp.eq.s32.totalorder %s22, 1
      %p135 = por %p133, %p134
      %p136 = scmp.ne.s32.totalorder %s125, %s126
      %p137 = scmp.eq.s32.totalorder %s22, 0
      %p138 = por %p136, %p137
      %p139 = scmp.ne.s32.totalorder %s125, %s126
      %p140 = scmp.eq.s32.totalorder %s23, 1
      %p141 = por %p139, %p140
      %p143 = scmp.ne.s32.totalorder %s126, %s142
      %p144 = scmp.eq.s32.totalorder %s23, 0
      %p145 = por %p143, %p144
      %p146 = scmp.le.s32.totalorder 1, %s17
      %p147 = scmp.lt.s32.totalorder %s17, 3
      %p148 = pnand %p146, %p147
      %p149 = pneg %p148
      // Predicated region
      $region9: #{tpu_custom_call.1} parent=5 // pred_check
        _
      $region10: #{tpu_custom_call.1} parent=5 // pred_check_branch
        %151 = sbr.rel (%p148) target = $region12
      $region11: #{tpu_custom_call.1} parent=5 // pred_region
        %s152 = ssub.s32 %s17, 1
        // Predicated region
        $region13: #{tpu_custom_call.1} parent=11 // pred_check
          %p153 = pneg %p57
        $region14: #{tpu_custom_call.1} parent=11 // pred_check_branch
          %155 = sbr.rel (%p153) target = $region16
        $region15: #{tpu_custom_call.1} parent=11 // pred_region
          %157 = vsyncadd [#allocation5], 0
          %s159 = sshll.u32 %s0, 4
          %s160 = int_to_ptr.hbm [resolvable:$true] %s159
          %162 = dma.hbm_to_smem %s160, 64, [#allocation2], [#allocation5]
        $region16: #{tpu_custom_call.1} parent=11 // pred_fallthru
          _
        // Predicated region
        $region17: #{tpu_custom_call.1} parent=11 // pred_check
          %p163 = pneg %p78
        $region18: #{tpu_custom_call.1} parent=11 // pred_check_branch
          %165 = sbr.rel (%p163) target = $region20
        $region19: #{tpu_custom_call.1} parent=11 // pred_region
          %167 = vsyncadd [#allocation7], 0
          %s169 = sshll.u32 %s1, 4
          %s170 = int_to_ptr.hbm [resolvable:$true] %s169
          %172 = dma.hbm_to_smem %s170, 16, [#allocation6], [#allocation7]
        $region20: #{tpu_custom_call.1} parent=11 // pred_fallthru
          _
      $region12: #{tpu_custom_call.1} parent=5 // pred_fallthru
        _
      %p173 = scmp.lt.s32.totalorder %s17, 2
      // Predicated region
      $region21: #{tpu_custom_call.1} parent=5 // pred_check
        %p174 = pneg %p173
      $region22: #{tpu_custom_call.1} parent=5 // pred_check_branch
        %176 = sbr.rel (%p174) target = $region24
      $region23: #{tpu_custom_call.1} parent=5 // pred_region
        // Predicated region
        $region25: #{tpu_custom_call.1} parent=23 // pred_check
          %p177 = pneg %p102
        $region26: #{tpu_custom_call.1} parent=23 // pred_check_branch
          %179 = sbr.rel (%p177) target = $region28
        $region27: #{tpu_custom_call.1} parent=23 // pred_region
          %s180 = sand.u32 %s92, 1
          %s181 = scalar_lea.sflag [#allocation3], %s180
          %s182 = sand.u32 %s92, 1
          %s183 = smul.addr %s182, 64
          %s184 = scalar_lea.vmem [#allocation8], %s183
          %s185 = smul.u32 2, %s25
          %187 = vsyncadd %s181, 0
          %s188 = sadd.s32 %s26, %s185
          %s189 = smul.addr %s24, 8
          %s190 = sadd.s32 %s188, %s189
          %s191 = smul.addr %s190, 8
          %s192 = scalar_lea.hbm %s2, %s191
          %s193 = sshll.u32 %s192, 4
          %s194 = int_to_ptr.hbm [resolvable:$true] %s193
          %s195 = sshll.u32 %s184, 4
          %s196 = int_to_ptr.vmem [resolvable:$true] %s195
          %201 = dma.hbm_to_vmem [thread:$0]  %s194, 1024, %s196, %s181, 128, 128, 8
        $region28: #{tpu_custom_call.1} parent=23 // pred_fallthru
          _
      $region24: #{tpu_custom_call.1} parent=5 // pred_fallthru
        _
      %p202 = scmp.le.s32.totalorder 1, %s17
      %p203 = scmp.lt.s32.totalorder %s17, 3
      %p204 = pnand %p202, %p203
      %p205 = pneg %p204
      // Predicated region
      $region29: #{tpu_custom_call.1} parent=5 // pred_check
        _
      $region30: #{tpu_custom_call.1} parent=5 // pred_check_branch
        %207 = sbr.rel (%p204) target = $region32
      $region31: #{tpu_custom_call.1} parent=5 // pred_region
        %s208 = ssub.s32 %s17, 1
        // Predicated region
        $region33: #{tpu_custom_call.1} parent=31 // pred_check
          %p209 = pneg %p57
        $region34: #{tpu_custom_call.1} parent=31 // pred_check_branch
          %211 = sbr.rel (%p209) target = $region36
        $region35: #{tpu_custom_call.1} parent=31 // pred_region
          %213 = dma.done [#allocation5], 64
        $region36: #{tpu_custom_call.1} parent=31 // pred_fallthru
          _
        // Predicated region
        $region37: #{tpu_custom_call.1} parent=31 // pred_check
          %p214 = pneg %p78
        $region38: #{tpu_custom_call.1} parent=31 // pred_check_branch
          %216 = sbr.rel (%p214) target = $region40
        $region39: #{tpu_custom_call.1} parent=31 // pred_region
          %218 = dma.done [#allocation7], 16
        $region40: #{tpu_custom_call.1} parent=31 // pred_fallthru
          _
        %s219 = sand.u32 %s95, 1
        %s220 = scalar_lea.sflag [#allocation3], %s219
        %s221 = sand.u32 %s95, 1
        %s222 = smul.addr %s221, 64
        %s223 = scalar_lea.vmem [#allocation8], %s222
        // Predicated region
        $region41: #{tpu_custom_call.1} parent=31 // pred_check
          %p224 = pneg %p108
        $region42: #{tpu_custom_call.1} parent=31 // pred_check_branch
          %226 = sbr.rel (%p224) target = $region44
        $region43: #{tpu_custom_call.1} parent=31 // pred_region
          %228 = dma.done %s220, 1024
        $region44: #{tpu_custom_call.1} parent=31 // pred_fallthru
          _
        %229 = sfence
        %p230 = pneg %p57
        %p231 = pneg %p54
        %p232 = pneg %p78
        %p233 = pneg %p75
        %s234 = sand.u32 %s95, 1
        %s235 = scalar_lea.sflag [#allocation3], %s234
        %s236 = sand.u32 %s95, 1
        %s237 = smul.addr %s236, 64
        %s238 = scalar_lea.vmem [#allocation8], %s237
        %p239 = pneg %p108
        %p240 = pneg %p105
        %p241 = pneg %p138
        %p242 = pneg %p135
        %s243 = sand.u32 %s125, 1
        %s244 = scalar_lea.sflag [#allocation4], %s243
        %s245 = sand.u32 %s125, 1
        %s246 = smul.addr %s245, 48
        %s247 = scalar_lea.vmem [#allocation9], %s246
        %s248 = smul.u32 2, %s28
        %s249 = smul.u32 2, %s28
        %v250 = vld [vmem:[%s223] sm:$0xff]
        %v251 = vld [vmem:[%s223 + $0x8] sm:$0xff]
        %s252 = sld [smem:[#allocation2]]
        %v253 = vstv %s252
        %v254 = vmul.f32 %v250, %v253
        %v255 = vmul.f32 %v251, %v253
        %s256 = sld [smem:[#allocation6]]
        %v257 = vstv %s256
        %v258 = vadd.f32 %v254, %v257
        %v259 = vadd.f32 %v255, %v257
        %s260 = scalar_lea.vmem %s223, 16 [#allocation8]
        %v261 = vld [vmem:[%s260] sm:$0xff]
        %v262 = vld [vmem:[%s260 + $0x8] sm:$0xff]
        %s263 = sld [smem:[#allocation2 + $0x1]]
        %v264 = vstv %s263
        %v265 = vmul.f32 %v261, %v264
        %v266 = vmul.f32 %v262, %v264
        %v267 = vadd.f32 %v258, %v265
        %v268 = vadd.f32 %v259, %v266
        %s269 = scalar_lea.vmem %s223, 32 [#allocation8]
        %v270 = vld [vmem:[%s269] sm:$0xff]
        %v271 = vld [vmem:[%s269 + $0x8] sm:$0xff]
        %s272 = sld [smem:[#allocation2 + $0x2]]
        %v273 = vstv %s272
        %v274 = vmul.f32 %v270, %v273
        %v275 = vmul.f32 %v271, %v273
        %v276 = vadd.f32 %v267, %v274
        %v277 = vadd.f32 %v268, %v275
        %s278 = scalar_lea.vmem %s223, 48 [#allocation8]
        %v279 = vld [vmem:[%s278] sm:$0xff]
        %v280 = vld [vmem:[%s278 + $0x8] sm:$0xff]
        %s281 = sld [smem:[#allocation2 + $0x3]]
        %v282 = vstv %s281
        %v283 = vmul.f32 %v279, %v282
        %v284 = vmul.f32 %v280, %v282
        %v285 = vadd.f32 %v276, %v283
        %v286 = vadd.f32 %v277, %v284
        %vm287 = vcmask 130048
        %288 = vst.msk [vmem:[%s247] sm:$0xff] %vm287, %v285
        %289 = vst.msk [vmem:[%s247 + $0x8] sm:$0xff] %vm287, %v286
        %v290 = vld [vmem:[%s223] sm:$0xff]
        %v291 = vld [vmem:[%s223 + $0x8] sm:$0xff]
        %s292 = sld [smem:[#allocation2 + $0x80]]
        %v293 = vstv %s292
        %v294 = vmul.f32 %v290, %v293
        %v295 = vmul.f32 %v291, %v293
        %s296 = sld [smem:[#allocation6 + $0x1]]
        %v297 = vstv %s296
        %v298 = vadd.f32 %v294, %v297
        %v299 = vadd.f32 %v295, %v297
        %v300 = vld [vmem:[%s260] sm:$0xff]
        %v301 = vld [vmem:[%s260 + $0x8] sm:$0xff]
        %s302 = sld [smem:[#allocation2 + $0x81]]
        %v303 = vstv %s302
        %v304 = vmul.f32 %v300, %v303
        %v305 = vmul.f32 %v301, %v303
        %v306 = vadd.f32 %v298, %v304
        %v307 = vadd.f32 %v299, %v305
        %v308 = vld [vmem:[%s269] sm:$0xff]
        %v309 = vld [vmem:[%s269 + $0x8] sm:$0xff]
        %s310 = sld [smem:[#allocation2 + $0x82]]
        %v311 = vstv %s310
        %v312 = vmul.f32 %v308, %v311
        %v313 = vmul.f32 %v309, %v311
        %v314 = vadd.f32 %v306, %v312
        %v315 = vadd.f32 %v307, %v313
        %v316 = vld [vmem:[%s278] sm:$0xff]
        %v317 = vld [vmem:[%s278 + $0x8] sm:$0xff]
        %s318 = sld [smem:[#allocation2 + $0x83]]
        %v319 = vstv %s318
        %v320 = vmul.f32 %v316, %v319
        %v321 = vmul.f32 %v317, %v319
        %v322 = vadd.f32 %v314, %v320
        %v323 = vadd.f32 %v315, %v321
        %s324 = scalar_lea.vmem %s247, 16 [#allocation9]
        %325 = vst.msk [vmem:[%s324] sm:$0xff] %vm287, %v322
        %326 = vst.msk [vmem:[%s324 + $0x8] sm:$0xff] %vm287, %v323
        %v327 = vld [vmem:[%s223] sm:$0xff]
        %v328 = vld [vmem:[%s223 + $0x8] sm:$0xff]
        %s329 = sld [smem:[#allocation2 + $0x100]]
        %v330 = vstv %s329
        %v331 = vmul.f32 %v327, %v330
        %v332 = vmul.f32 %v328, %v330
        %s333 = sld [smem:[#allocation6 + $0x2]]
        %v334 = vstv %s333
        %v335 = vadd.f32 %v331, %v334
        %v336 = vadd.f32 %v332, %v334
        %v337 = vld [vmem:[%s260] sm:$0xff]
        %v338 = vld [vmem:[%s260 + $0x8] sm:$0xff]
        %s339 = sld [smem:[#allocation2 + $0x101]]
        %v340 = vstv %s339
        %v341 = vmul.f32 %v337, %v340
        %v342 = vmul.f32 %v338, %v340
        %v343 = vadd.f32 %v335, %v341
        %v344 = vadd.f32 %v336, %v342
        %v345 = vld [vmem:[%s269] sm:$0xff]
        %v346 = vld [vmem:[%s269 + $0x8] sm:$0xff]
        %s347 = sld [smem:[#allocation2 + $0x102]]
        %v348 = vstv %s347
        %v349 = vmul.f32 %v345, %v348
        %v350 = vmul.f32 %v346, %v348
        %v351 = vadd.f32 %v343, %v349
        %v352 = vadd.f32 %v344, %v350
        %v353 = vld [vmem:[%s278] sm:$0xff]
        %v354 = vld [vmem:[%s278 + $0x8] sm:$0xff]
        %s355 = sld [smem:[#allocation2 + $0x103]]
        %v356 = vstv %s355
        %v357 = vmul.f32 %v353, %v356
        %v358 = vmul.f32 %v354, %v356
        %v359 = vadd.f32 %v351, %v357
        %v360 = vadd.f32 %v352, %v358
        %s361 = scalar_lea.vmem %s247, 32 [#allocation9]
        %362 = vst.msk [vmem:[%s361] sm:$0xff] %vm287, %v359
        %363 = vst.msk [vmem:[%s361 + $0x8] sm:$0xff] %vm287, %v360
        %s364 = sand.u32 %s125, 1
        %s365 = scalar_lea.sflag [#allocation4], %s364
        %s366 = sand.u32 %s125, 1
        %s367 = smul.addr %s366, 48
        %s368 = scalar_lea.vmem [#allocation9], %s367
        // Predicated region
        $region45: #{tpu_custom_call.1} parent=31 // pred_check
          %p369 = pneg %p135
        $region46: #{tpu_custom_call.1} parent=31 // pred_check_branch
          %371 = sbr.rel (%p369) target = $region48
        $region47: #{tpu_custom_call.1} parent=31 // pred_region
          %s372 = smul.u32 2, %s28
          %374 = vsyncadd %s365, 0
          %s375 = sadd.s32 %s29, %s372
          %s376 = smul.addr %s27, 6
          %s377 = sadd.s32 %s375, %s376
          %s378 = smul.addr %s377, 8
          %s379 = scalar_lea.hbm %s3, %s378
          %s380 = sshll.u32 %s368, 4
          %s381 = int_to_ptr.vmem [resolvable:$true] %s380
          %s382 = sshll.u32 %s379, 4
          %s383 = int_to_ptr.hbm [resolvable:$true] %s382
          %388 = dma.vmem_to_hbm [thread:$0]  %s381, 768, %s383, %s365, 128, 128, 8
        $region48: #{tpu_custom_call.1} parent=31 // pred_fallthru
          _
      $region32: #{tpu_custom_call.1} parent=5 // pred_fallthru
        _
      %p389 = scmp.le.s32.totalorder 2, %s17
      // Predicated region
      $region49: #{tpu_custom_call.1} parent=5 // pred_check
        %p390 = pneg %p389
      $region50: #{tpu_custom_call.1} parent=5 // pred_check_branch
        %392 = sbr.rel (%p390) target = $region52
      $region51: #{tpu_custom_call.1} parent=5 // pred_region
        %s393 = ssub.s32 %s17, 2
        // Predicated region
        $region53: #{tpu_custom_call.1} parent=51 // pred_check
          %p394 = pneg %p141
        $region54: #{tpu_custom_call.1} parent=51 // pred_check_branch
          %396 = sbr.rel (%p394) target = $region56
        $region55: #{tpu_custom_call.1} parent=51 // pred_region
          %s397 = sand.u32 %s126, 1
          %s398 = scalar_lea.sflag [#allocation4], %s397
          %s399 = sand.u32 %s126, 1
          %s400 = smul.addr %s399, 48
          %s401 = scalar_lea.vmem [#allocation9], %s400
          %403 = dma.done %s398, 768
        $region56: #{tpu_custom_call.1} parent=51 // pred_fallthru
          _
      $region52: #{tpu_custom_call.1} parent=5 // pred_fallthru
        _
    $region6: #{tpu_custom_call.1} parent=1 // loop_footer
      %s21 = sadd.s32 1, %s17
    $region7: #{tpu_custom_call.1} parent=1 // loop_footer_branch
      %16 = sbr.rel target = $region3
    $region8: #{tpu_custom_call.1} parent=1 // loop_exit
      _
    %404 = vsyncpa [#allocation3], 1
    %s405 = scalar_lea.sflag [#allocation3], 1
    %406 = vsyncpa %s405, 1
    %407 = vsyncpa [#allocation4], 1
    %s408 = scalar_lea.sflag [#allocation4], 1
    %409 = vsyncpa %s408, 1
    %410 = vsyncpa [#allocation5], 1
    %s411 = scalar_lea.sflag [#allocation5], 1
    %412 = vsyncpa %s411, 1
    %413 = vsyncpa [#allocation7], 1

</llo_original>
